<compile_context>
chip_gen: v5e
topology: v5e:2x2
jax: 0.10.0
libtpu: 0.0.40
codegen_flags: <defaults>
</compile_context>

<pallas_src>
import functools

import jax
import jax.numpy as jnp
import numpy as np
from jax.experimental import pallas as pl
from jax.experimental.pallas import tpu as pltpu


NEG_SLOPE = 0.01  # nn.LeakyReLU() default (the module's `alpha` is unused in forward)


def _leaky(x):
    return jnp.where(x >= 0, x, NEG_SLOPE * x)


def _encode_kernel(x_ref, pred_ref,
                   wso_ref, bso_ref,
                   wfs_ref, wfo_ref, bf_ref,
                   w1n_ref, w1p_ref, b1_ref,
                   w2_ref, b2_ref,
                   out_ref,
                   *, bt, support_num, query_num, compute_dtype):
    S, Q = support_num, query_num
    T = S + Q
    cdt = compute_dtype

    # In-kernel cast of the dominant input (HBM/DMA carries the original dtype).
    x = x_ref[...].astype(cdt)                                      # (bt*2T, F)

    # fc_subj | fc_obj fused into one wide matmul over ALL 2T rows per batch.
    # Each row only uses the half it needs; f32 accumulation, f32 bias + leaky.
    y = _leaky(jnp.dot(x, wso_ref[...], preferred_element_type=jnp.float32)
               + bso_ref[...])                                      # (bt*2T, F) f32
    yc = y.astype(cdt)

    # fc_fusion split into subject / object contributions.  wfs/wfo are
    # zero-padded over the unused half of K and to nnf_p lanes, so there is no
    # lane slicing of y and N is lane/MXU friendly.
    fs = jnp.dot(yc, wfs_ref[...], preferred_element_type=jnp.float32)   # (bt*2T, nnf_p)
    fo = jnp.dot(yc, wfo_ref[...], preferred_element_type=jnp.float32)   # (bt*2T, nnf_p)

    # Pair each subject row with its object partner.  Pure value-level slices +
    # adds on the narrow (nnf_p-wide) data — no masked scratch stores.
    # TODO(synk): for very large bt (>32 batches/step) fold this unrolled
    # pairing into a fori_loop over sublane-aligned scratch instead.
    pieces = []
    for c in range(bt):
        base = c * 2 * T
        pieces.append(fs[base:base + S] + fo[base + S:base + 2 * S])          # support pairs
        pieces.append(fs[base + 2 * S:base + 2 * S + Q]
                      + fo[base + 2 * S + Q:base + 2 * T])                    # query pairs
    fused = jnp.concatenate(pieces, axis=0)                           # (bt*T, nnf_p)
    new_node = _leaky(fused + bf_ref[...])                            # f32

    # fc_fusion_predicate layer 1 on cat([new_node, predicate], -1), split.
    pred = pred_ref[...].astype(cdt)
    h = _leaky(jnp.dot(new_node.astype(cdt), w1n_ref[...],
                       preferred_element_type=jnp.float32)
               + jnp.dot(pred, w1p_ref[...], preferred_element_type=jnp.float32)
               + b1_ref[...])                                         # (bt*T, nnf_p) f32

    # fc_fusion_predicate layer 2; lane-dense (nnf_p-wide) full-width store.
    out = _leaky(jnp.dot(h.astype(cdt), w2_ref[...],
                         preferred_element_type=jnp.float32) + b2_ref[...])
    out_ref[...] = out.astype(out_ref.dtype)


def _vmem_capacity_bytes():
    """Physical VMEM per TensorCore; falls back to the v7x 64 MiB if unknown."""
    try:
        cap = getattr(pltpu.get_tpu_info(), "vmem_capacity_bytes", None)
        if cap:
            return int(cap)
    except Exception:
        pass
    return 64 * 1024 * 1024


def _vmem_block_bytes(bt, T, F, nnf, nnf_p, in_b, pred_b, out_b, w_b):
    """Rough per-step footprint: double-buffered blocks + weights + f32 temps."""
    rows_in, rows_out = bt * 2 * T, bt * T
    tiles = 2 * (rows_in * F * in_b + rows_out * nnf * pred_b + rows_out * nnf_p * out_b)
    weights = 2 * (w_b * (F * F + 2 * F * nnf_p + 2 * nnf_p * nnf_p + nnf * nnf_p)
                   + 4 * (F + 4 * nnf_p))
    interm = 4 * (rows_in * (F + 2 * nnf_p) + rows_out * 3 * nnf_p)
    return tiles + weights + interm


def encode_forward(object_node_feat, predicate_node_feat, params,
                   support_num, query_num, *,
                   compute_dtype=None,
                   target_rows=None,
                   vmem_budget_bytes=None):
    """Pallas TPU implementation of ENCODE.forward."""
    B, total_nodes, F = object_node_feat.shape
    S, Q = support_num, query_num
    T = S + Q
    nnf = predicate_node_feat.shape[-1]
    assert S > 0 and Q > 0
    assert total_nodes == 2 * T, "object_node_feat must hold 2*(support+query) nodes"
    assert F % 2 == 0, "features must be even (fc_subj/fc_obj output features//2)"
    half = F // 2

    (ws, bs), (wo, bo), (wf, bf), (w1, b1), (w2, b2) = params
    assert ws.shape == (F, half) and wo.shape == (F, half)
    assert wf.shape == (F, nnf), "fc_fusion weight must be [features, new_node_feature]"
    assert w1.shape == (2 * nnf, nnf) and w2.shape == (nnf, nnf)
    assert predicate_node_feat.shape == (B, T, nnf)

    out_dtype = object_node_feat.dtype
    cdt = jnp.dtype(compute_dtype) if compute_dtype is not None else jnp.dtype(out_dtype)
    nnf_p = ((nnf + 127) // 128) * 128            # lane-dense padded output width

    # ---- parameter prep (all tiny, wrapper-side) -----------------------------
    to_c = lambda a: a.astype(cdt)
    row2 = lambda b: jnp.asarray(b).reshape(1, -1)
    pad_cols = lambda a, n: jnp.pad(a, ((0, 0), (0, n - a.shape[1])))

    wso_c = to_c(jnp.concatenate([ws, wo], axis=1))                              # (F, F)
    bso_f = jnp.concatenate([row2(bs), row2(bo)], axis=1).astype(jnp.float32)    # (1, F)

    zero_half = jnp.zeros((half, nnf_p), wf.dtype)
    wfs_c = to_c(jnp.concatenate([pad_cols(wf[:half], nnf_p), zero_half], axis=0))  # (F, nnf_p)
    wfo_c = to_c(jnp.concatenate([zero_half, pad_cols(wf[half:], nnf_p)], axis=0))  # (F, nnf_p)
    bf_f = pad_cols(row2(bf), nnf_p).astype(jnp.float32)

    zero_rows = jnp.zeros((nnf_p - nnf, nnf_p), w1.dtype)
    w1n_c = to_c(jnp.concatenate([pad_cols(w1[:nnf], nnf_p), zero_rows], axis=0))   # (nnf_p, nnf_p)
    w1p_c = to_c(pad_cols(w1[nnf:], nnf_p))                                          # (nnf, nnf_p)
    b1_f = pad_cols(row2(b1), nnf_p).astype(jnp.float32)
    w2_c = to_c(jnp.concatenate([pad_cols(w2, nnf_p), zero_rows], axis=0))           # (nnf_p, nnf_p)
    b2_f = pad_cols(row2(b2), nnf_p).astype(jnp.float32)

    # Flat row-major views: free metadata reshapes, NO dtype cast here — the
    # dominant input is cast inside the kernel (avoids an extra HBM pass).
    x_flat = object_node_feat.reshape(B * 2 * T, F)
    pred_flat = predicate_node_feat.reshape(B * T, nnf)

    in_b = jnp.dtype(object_node_feat.dtype).itemsize
    pred_b = jnp.dtype(predicate_node_feat.dtype).itemsize
    out_b = jnp.dtype(out_dtype).itemsize
    w_b = cdt.itemsize

    cap = _vmem_capacity_bytes()
    if vmem_budget_bytes is None:
        # ~24 MiB block budget on v7x (64 MiB VMEM/TC), ~56 MiB on v5e/v6e (128 MiB).
        vmem_budget_bytes = max(24 << 20, cap // 2 - (8 << 20))
    if target_rows is None:
        target_rows = 1024 if cap >= (96 << 20) else 512

    sublane = lambda nbytes: {4: 8, 2: 16, 1: 32}.get(nbytes, 8)
    row_align = max(sublane(in_b), sublane(pred_b), sublane(out_b))

    def aligned(d):
        return d == B or (d * T) % row_align == 0

    def fits(d):
        return _vmem_block_bytes(d, T, F, nnf, nnf_p, in_b, pred_b, out_b,
                                 w_b) <= vmem_budget_bytes

    MAX_BT = 32  # bounds the unrolled pairing (2 slice/adds per batch per step)
    divisors = [d for d in range(1, B + 1) if B % d == 0]
    valid = [d for d in divisors if aligned(d) and fits(d)]
    sized = [d for d in valid if d * T <= max(target_rows, T) and d <= MAX_BT]
    multi = [d for d in sized if B // d >= 2]   # keep >=2 grid steps for v7x's two TCs
    if multi:
        bt = max(multi)
    elif sized:
        bt = max(sized)
    elif valid:
        bt = min(valid)
    else:
        # TODO(synk): ragged (B, S+Q) combinations would need batch padding to
        # get aligned sub-batch tiles; fall back to one full-array step.
        bt = B

    rows_in, rows_out = bt * 2 * T, bt * T
    grid = (B // bt,)
    est = _vmem_block_bytes(bt, T, F, nnf, nnf_p, in_b, pred_b, out_b, w_b)
    vmem_limit = int(min(cap - (16 << 20), max(32 << 20, int(1.25 * est))))

    Rin, Rout = B * 2 * T, B * T
    flops = 2 * (Rin * F * F + 2 * Rin * F * nnf_p
                 + Rout * (nnf_p + nnf) * nnf_p + Rout * nnf_p * nnf_p)
    bytes_accessed = (Rin * F * in_b + Rout * nnf * pred_b + Rout * nnf_p * out_b
                      + w_b * (F * F + 2 * F * nnf_p + 2 * nnf_p * nnf_p + nnf * nnf_p)
                      + 4 * (F + 4 * nnf_p))
    cost = pl.CostEstimate(flops=int(flops), transcendentals=0,
                           bytes_accessed=int(bytes_accessed))

    def full(a):
        nd = a.ndim
        return pl.BlockSpec(a.shape, lambda i: (0,) * nd)

    kernel = functools.partial(_encode_kernel, bt=bt, support_num=S,
                               query_num=Q, compute_dtype=cdt)

    # TODO(synk): the grid-invariant weight/bias blocks could use
    # pipeline_mode=pl.Buffered(1) to drop their double buffers; left at the
    # default since they are tiny relative to the activation tiles.
    padded = pl.pallas_call(
        kernel,
        out_shape=jax.ShapeDtypeStruct((B * T, nnf_p), out_dtype),
        grid_spec=pltpu.PrefetchScalarGridSpec(
            num_scalar_prefetch=0,
            grid=grid,
            in_specs=[
                pl.BlockSpec((rows_in, F), lambda i: (i, 0)),      # object nodes (flat view)
                pl.BlockSpec((rows_out, nnf), lambda i: (i, 0)),   # predicate nodes
                full(wso_c), full(bso_f),
                full(wfs_c), full(wfo_c), full(bf_f),
                full(w1n_c), full(w1p_c), full(b1_f),
                full(w2_c), full(b2_f),
            ],
            out_specs=pl.BlockSpec((rows_out, nnf_p), lambda i: (i, 0)),
        ),
        compiler_params=pltpu.CompilerParams(
            dimension_semantics=("parallel",),   # batch tiles split across v7x's 2 TCs
            vmem_limit_bytes=vmem_limit),
        cost_estimate=cost,
    )(x_flat, pred_flat,
      wso_c, bso_f, wfs_c, wfo_c, bf_f, w1n_c, w1p_c, b1_f, w2_c, b2_f)

    # Kernel output is lane-dense (nnf_p wide); drop the zero padding here.
    return padded[:, :nnf].reshape(B, T, nnf)


def init_params(key, features, new_node_feature, dtype=jnp.float32):
    """Deterministic synthetic parameters. Weights are [in, out], biases [1, out]."""
    half = features // 2
    keys = jax.random.split(key, 10)

    def lin(kw, kb, fan_in, fan_out):
        bound = 1.0 / np.sqrt(fan_in)
        w = jax.random.uniform(kw, (fan_in, fan_out), dtype, -bound, bound)
        b = jax.random.uniform(kb, (1, fan_out), dtype, -bound, bound)
        return w, b

    fc_subj = lin(keys[0], keys[1], features, half)
    fc_obj = lin(keys[2], keys[3], features, half)
    fc_fusion = lin(keys[4], keys[5], features, new_node_feature)
    fc_fp1 = lin(keys[6], keys[7], 2 * new_node_feature, new_node_feature)
    fc_fp2 = lin(keys[8], keys[9], new_node_feature, new_node_feature)
    return fc_subj, fc_obj, fc_fusion, fc_fp1, fc_fp2


def encode_reference(object_node_feat, predicate_node_feat, params,
                     support_num, query_num):
    """Pure-JAX replica of the PyTorch forward, used to validate the kernel."""
    (ws, bs), (wo, bo), (wf, bf), (w1, b1), (w2, b2) = params
    B, _, features = object_node_feat.shape
    S, Q = support_num, query_num
    nnf = predicate_node_feat.shape[-1]

    def leaky(x):
        return jnp.where(x >= 0, x, NEG_SLOPE * x)

    support = object_node_feat[:, :2 * S, :]
    query = object_node_feat[:, 2 * S:, :]

    def fuse(subj_feat, obj_feat):
        s = leaky(subj_feat.reshape(-1, features) @ ws + bs)
        o = leaky(obj_feat.reshape(-1, features) @ wo + bo)
        cat = jnp.concatenate([s, o], axis=1)
        return leaky(cat @ wf + bf)

    scores_support = fuse(support[:, :S, :], support[:, S:, :])
    scores_query = fuse(query[:, :Q, :], query[:, Q:, :])
    new_node = jnp.concatenate(
        [scores_support.reshape(B, S, nnf), scores_query.reshape(B, Q, nnf)],
        axis=1)
    cat2 = jnp.concatenate([new_node, predicate_node_feat], axis=2)
    x = cat2.reshape(-1, 2 * nnf)
    x = leaky(x @ w1 + b1)
    x = leaky(x @ w2 + b2)
    return x.reshape(B, S + Q, nnf)


if __name__ == "__main__":
    support_num = 4
    query_num = 4
    features = 32
    new_node_feature = 16
    batch = 2
    tem_args = support_num + query_num

    key = jax.random.PRNGKey(0)
    k_obj, k_pred, k_param = jax.random.split(key, 3)

    object_node_feat = jax.random.normal(
        k_obj, (batch, 2 * tem_args, features), jnp.float32)
    predicate_node_feat = jax.random.normal(
        k_pred, (batch, tem_args, new_node_feature), jnp.float32)
    params = init_params(k_param, features, new_node_feature)

    ref = encode_reference(object_node_feat, predicate_node_feat, params,
                           support_num, query_num)

    # float32 path (tight check against the pure-JAX reference).
    run_f32 = jax.jit(functools.partial(encode_forward,
                                        support_num=support_num,
                                        query_num=query_num))
    out_f32 = jax.block_until_ready(run_f32(object_node_feat,
                                            predicate_node_feat, params))
    np.testing.assert_allclose(np.asarray(out_f32), np.asarray(ref),
                               rtol=5e-5, atol=5e-5)
    assert out_f32.shape == (batch, tem_args, new_node_feature)

    # bfloat16-operand path (recommended on v6e/v7x): bf16 MXU operands only,
    # f32 accumulation / bias / LeakyReLU; loose tolerance vs the f32 reference.
    run_bf16 = jax.jit(functools.partial(encode_forward,
                                         support_num=support_num,
                                         query_num=query_num,
                                         compute_dtype=jnp.bfloat16))
    out_bf16 = jax.block_until_ready(run_bf16(object_node_feat,
                                              predicate_node_feat, params))
    np.testing.assert_allclose(np.asarray(out_bf16), np.asarray(ref),
                               rtol=5e-2, atol=5e-2)

    print("KERNEL_OK")
</pallas_src>

<mosaic_0001>
module attributes {stable_mosaic.version = 11 : i64} {
  func.func @_encode_kernel(%arg0: i32, %arg1: memref<16x32xf32, #tpu.memory_space<vmem>>, %arg2: memref<8x16xf32, #tpu.memory_space<vmem>>, %arg3: memref<32x32xf32, #tpu.memory_space<vmem>>, %arg4: memref<1x32xf32, #tpu.memory_space<vmem>>, %arg5: memref<32x128xf32, #tpu.memory_space<vmem>>, %arg6: memref<32x128xf32, #tpu.memory_space<vmem>>, %arg7: memref<1x128xf32, #tpu.memory_space<vmem>>, %arg8: memref<128x128xf32, #tpu.memory_space<vmem>>, %arg9: memref<16x128xf32, #tpu.memory_space<vmem>>, %arg10: memref<1x128xf32, #tpu.memory_space<vmem>>, %arg11: memref<128x128xf32, #tpu.memory_space<vmem>>, %arg12: memref<1x128xf32, #tpu.memory_space<vmem>>, %arg13: memref<8x128xf32, #tpu.memory_space<vmem>>) attributes {dimension_semantics = [#tpu.dimension_semantics<parallel>], iteration_bounds = array<i64: 2>, scalar_prefetch = 0 : i64, scratch_operands = 0 : i64, tpu.core_type = #tpu.core_type<tc>, window_params = [{transform_indices = @transform_0, window_bounds = array<i64: 16, 32>}, {transform_indices = @transform_1, window_bounds = array<i64: 8, 16>}, {pipeline_mode = #tpu.pipeline_mode<synchronous>, transform_indices = @transform_2, window_bounds = array<i64: 32, 32>}, {pipeline_mode = #tpu.pipeline_mode<synchronous>, transform_indices = @transform_3, window_bounds = array<i64: 1, 32>}, {pipeline_mode = #tpu.pipeline_mode<synchronous>, transform_indices = @transform_4, window_bounds = array<i64: 32, 128>}, {pipeline_mode = #tpu.pipeline_mode<synchronous>, transform_indices = @transform_5, window_bounds = array<i64: 32, 128>}, {pipeline_mode = #tpu.pipeline_mode<synchronous>, transform_indices = @transform_6, window_bounds = array<i64: 1, 128>}, {pipeline_mode = #tpu.pipeline_mode<synchronous>, transform_indices = @transform_7, window_bounds = array<i64: 128, 128>}, {pipeline_mode = #tpu.pipeline_mode<synchronous>, transform_indices = @transform_8, window_bounds = array<i64: 16, 128>}, {pipeline_mode = #tpu.pipeline_mode<synchronous>, transform_indices = @transform_9, window_bounds = array<i64: 1, 128>}, {pipeline_mode = #tpu.pipeline_mode<synchronous>, transform_indices = @transform_10, window_bounds = array<i64: 128, 128>}, {pipeline_mode = #tpu.pipeline_mode<synchronous>, transform_indices = @transform_11, window_bounds = array<i64: 1, 128>}, {transform_indices = @transform_12, window_bounds = array<i64: 8, 128>}]} {
    %c0 = arith.constant 0 : index
    %c0_0 = arith.constant 0 : index
    %0 = vector.load %arg1[%c0, %c0_0] : memref<16x32xf32, #tpu.memory_space<vmem>>, vector<16x32xf32>
    %c0_1 = arith.constant 0 : index
    %c0_2 = arith.constant 0 : index
    %1 = vector.load %arg3[%c0_1, %c0_2] : memref<32x32xf32, #tpu.memory_space<vmem>>, vector<32x32xf32>
    %cst = arith.constant dense<0.000000e+00> : vector<16x32xf32>
    %2 = tpu.matmul %0, %1, %cst {dimension_numbers = #tpu.dot_dimension_numbers<[1], [0], [0], [1], [0, 0, 1, 1], [], []>} : vector<16x32xf32>, vector<32x32xf32>, vector<16x32xf32> -> vector<16x32xf32>
    %c0_3 = arith.constant 0 : index
    %c0_4 = arith.constant 0 : index
    %3 = vector.load %arg4[%c0_3, %c0_4] : memref<1x32xf32, #tpu.memory_space<vmem>>, vector<1x32xf32>
    %4 = vector.broadcast %3 : vector<1x32xf32> to vector<16x32xf32>
    %5 = arith.addf %2, %4 : vector<16x32xf32>
    %cst_5 = arith.constant 0.000000e+00 : f32
    %6 = vector.broadcast %cst_5 : f32 to vector<16x32xf32>
    %7 = arith.cmpf oge, %5, %6 : vector<16x32xf32>
    %cst_6 = arith.constant 0.00999999977 : f32
    %8 = vector.broadcast %cst_6 : f32 to vector<16x32xf32>
    %9 = arith.mulf %8, %5 : vector<16x32xf32>
    %10 = arith.select %7, %5, %9 : vector<16x32xi1>, vector<16x32xf32>
    %c0_7 = arith.constant 0 : index
    %c0_8 = arith.constant 0 : index
    %11 = vector.load %arg5[%c0_7, %c0_8] : memref<32x128xf32, #tpu.memory_space<vmem>>, vector<32x128xf32>
    %cst_9 = arith.constant dense<0.000000e+00> : vector<16x128xf32>
    %12 = tpu.matmul %10, %11, %cst_9 {dimension_numbers = #tpu.dot_dimension_numbers<[1], [0], [0], [1], [0, 0, 1, 1], [], []>} : vector<16x32xf32>, vector<32x128xf32>, vector<16x128xf32> -> vector<16x128xf32>
    %c0_10 = arith.constant 0 : index
    %c0_11 = arith.constant 0 : index
    %13 = vector.load %arg6[%c0_10, %c0_11] : memref<32x128xf32, #tpu.memory_space<vmem>>, vector<32x128xf32>
    %cst_12 = arith.constant dense<0.000000e+00> : vector<16x128xf32>
    %14 = tpu.matmul %10, %13, %cst_12 {dimension_numbers = #tpu.dot_dimension_numbers<[1], [0], [0], [1], [0, 0, 1, 1], [], []>} : vector<16x32xf32>, vector<32x128xf32>, vector<16x128xf32> -> vector<16x128xf32>
    %15 = vector.extract_strided_slice %12 {offsets = [0, 0], sizes = [4, 128], strides = [1, 1]} : vector<16x128xf32> to vector<4x128xf32>
    %16 = vector.extract_strided_slice %14 {offsets = [4, 0], sizes = [4, 128], strides = [1, 1]} : vector<16x128xf32> to vector<4x128xf32>
    %17 = arith.addf %15, %16 : vector<4x128xf32>
    %18 = vector.extract_strided_slice %12 {offsets = [8, 0], sizes = [4, 128], strides = [1, 1]} : vector<16x128xf32> to vector<4x128xf32>
    %19 = vector.extract_strided_slice %14 {offsets = [12, 0], sizes = [4, 128], strides = [1, 1]} : vector<16x128xf32> to vector<4x128xf32>
    %20 = arith.addf %18, %19 : vector<4x128xf32>
    %21 = tpu.concatenate %17, %20 in 0 : vector<4x128xf32>, vector<4x128xf32> -> vector<8x128xf32>
    %c0_13 = arith.constant 0 : index
    %c0_14 = arith.constant 0 : index
    %22 = vector.load %arg7[%c0_13, %c0_14] : memref<1x128xf32, #tpu.memory_space<vmem>>, vector<1x128xf32>
    %23 = vector.broadcast %22 : vector<1x128xf32> to vector<8x128xf32>
    %24 = arith.addf %21, %23 : vector<8x128xf32>
    %cst_15 = arith.constant 0.000000e+00 : f32
    %25 = vector.broadcast %cst_15 : f32 to vector<8x128xf32>
    %26 = arith.cmpf oge, %24, %25 : vector<8x128xf32>
    %cst_16 = arith.constant 0.00999999977 : f32
    %27 = vector.broadcast %cst_16 : f32 to vector<8x128xf32>
    %28 = arith.mulf %27, %24 : vector<8x128xf32>
    %29 = arith.select %26, %24, %28 : vector<8x128xi1>, vector<8x128xf32>
    %c0_17 = arith.constant 0 : index
    %c0_18 = arith.constant 0 : index
    %30 = vector.load %arg2[%c0_17, %c0_18] : memref<8x16xf32, #tpu.memory_space<vmem>>, vector<8x16xf32>
    %c0_19 = arith.constant 0 : index
    %c0_20 = arith.constant 0 : index
    %31 = vector.load %arg8[%c0_19, %c0_20] : memref<128x128xf32, #tpu.memory_space<vmem>>, vector<128x128xf32>
    %cst_21 = arith.constant dense<0.000000e+00> : vector<8x128xf32>
    %32 = tpu.matmul %29, %31, %cst_21 {dimension_numbers = #tpu.dot_dimension_numbers<[1], [0], [0], [1], [0, 0, 1, 1], [], []>} : vector<8x128xf32>, vector<128x128xf32>, vector<8x128xf32> -> vector<8x128xf32>
    %c0_22 = arith.constant 0 : index
    %c0_23 = arith.constant 0 : index
    %33 = vector.load %arg9[%c0_22, %c0_23] : memref<16x128xf32, #tpu.memory_space<vmem>>, vector<16x128xf32>
    %cst_24 = arith.constant dense<0.000000e+00> : vector<8x128xf32>
    %34 = tpu.matmul %30, %33, %cst_24 {dimension_numbers = #tpu.dot_dimension_numbers<[1], [0], [0], [1], [0, 0, 1, 1], [], []>} : vector<8x16xf32>, vector<16x128xf32>, vector<8x128xf32> -> vector<8x128xf32>
    %35 = arith.addf %32, %34 : vector<8x128xf32>
    %c0_25 = arith.constant 0 : index
    %c0_26 = arith.constant 0 : index
    %36 = vector.load %arg10[%c0_25, %c0_26] : memref<1x128xf32, #tpu.memory_space<vmem>>, vector<1x128xf32>
    %37 = vector.broadcast %36 : vector<1x128xf32> to vector<8x128xf32>
    %38 = arith.addf %35, %37 : vector<8x128xf32>
    %cst_27 = arith.constant 0.000000e+00 : f32
    %39 = vector.broadcast %cst_27 : f32 to vector<8x128xf32>
    %40 = arith.cmpf oge, %38, %39 : vector<8x128xf32>
    %cst_28 = arith.constant 0.00999999977 : f32
    %41 = vector.broadcast %cst_28 : f32 to vector<8x128xf32>
    %42 = arith.mulf %41, %38 : vector<8x128xf32>
    %43 = arith.select %40, %38, %42 : vector<8x128xi1>, vector<8x128xf32>
    %c0_29 = arith.constant 0 : index
    %c0_30 = arith.constant 0 : index
    %44 = vector.load %arg11[%c0_29, %c0_30] : memref<128x128xf32, #tpu.memory_space<vmem>>, vector<128x128xf32>
    %cst_31 = arith.constant dense<0.000000e+00> : vector<8x128xf32>
    %45 = tpu.matmul %43, %44, %cst_31 {dimension_numbers = #tpu.dot_dimension_numbers<[1], [0], [0], [1], [0, 0, 1, 1], [], []>} : vector<8x128xf32>, vector<128x128xf32>, vector<8x128xf32> -> vector<8x128xf32>
    %c0_32 = arith.constant 0 : index
    %c0_33 = arith.constant 0 : index
    %46 = vector.load %arg12[%c0_32, %c0_33] : memref<1x128xf32, #tpu.memory_space<vmem>>, vector<1x128xf32>
    %47 = vector.broadcast %46 : vector<1x128xf32> to vector<8x128xf32>
    %48 = arith.addf %45, %47 : vector<8x128xf32>
    %cst_34 = arith.constant 0.000000e+00 : f32
    %49 = vector.broadcast %cst_34 : f32 to vector<8x128xf32>
    %50 = arith.cmpf oge, %48, %49 : vector<8x128xf32>
    %cst_35 = arith.constant 0.00999999977 : f32
    %51 = vector.broadcast %cst_35 : f32 to vector<8x128xf32>
    %52 = arith.mulf %51, %48 : vector<8x128xf32>
    %53 = arith.select %50, %48, %52 : vector<8x128xi1>, vector<8x128xf32>
    %c0_36 = arith.constant 0 : index
    %c0_37 = arith.constant 0 : index
    %54 = vector.load %arg13[%c0_36, %c0_37] : memref<8x128xf32, #tpu.memory_space<vmem>>, vector<8x128xf32>
    tpu.vector_store %arg13[%c0_36, %c0_37], %53 {strides = array<i32>} : memref<8x128xf32, #tpu.memory_space<vmem>>, vector<8x128xf32>,
    return
  }
  func.func @transform_0(%arg0: i32) -> (i32, i32) {
    %c0_i32 = arith.constant 0 : i32
    %c0_i32_0 = arith.constant 0 : i32
    return %arg0, %c0_i32 : i32, i32
  }
  func.func @transform_1(%arg0: i32) -> (i32, i32) {
    %c0_i32 = arith.constant 0 : i32
    %c0_i32_0 = arith.constant 0 : i32
    return %arg0, %c0_i32 : i32, i32
  }
  func.func @transform_2(%arg0: i32) -> (i32, i32) {
    %c0_i32 = arith.constant 0 : i32
    %c0_i32_0 = arith.constant 0 : i32
    %c0_i32_1 = arith.constant 0 : i32
    return %c0_i32, %c0_i32_0 : i32, i32
  }
  func.func @transform_3(%arg0: i32) -> (i32, i32) {
    %c0_i32 = arith.constant 0 : i32
    %c0_i32_0 = arith.constant 0 : i32
    %c0_i32_1 = arith.constant 0 : i32
    return %c0_i32, %c0_i32_0 : i32, i32
  }
  func.func @transform_4(%arg0: i32) -> (i32, i32) {
    %c0_i32 = arith.constant 0 : i32
    %c0_i32_0 = arith.constant 0 : i32
    %c0_i32_1 = arith.constant 0 : i32
    return %c0_i32, %c0_i32_0 : i32, i32
  }
  func.func @transform_5(%arg0: i32) -> (i32, i32) {
    %c0_i32 = arith.constant 0 : i32
    %c0_i32_0 = arith.constant 0 : i32
    %c0_i32_1 = arith.constant 0 : i32
    return %c0_i32, %c0_i32_0 : i32, i32
  }
  func.func @transform_6(%arg0: i32) -> (i32, i32) {
    %c0_i32 = arith.constant 0 : i32
    %c0_i32_0 = arith.constant 0 : i32
    %c0_i32_1 = arith.constant 0 : i32
    return %c0_i32, %c0_i32_0 : i32, i32
  }
  func.func @transform_7(%arg0: i32) -> (i32, i32) {
    %c0_i32 = arith.constant 0 : i32
    %c0_i32_0 = arith.constant 0 : i32
    %c0_i32_1 = arith.constant 0 : i32
    return %c0_i32, %c0_i32_0 : i32, i32
  }
  func.func @transform_8(%arg0: i32) -> (i32, i32) {
    %c0_i32 = arith.constant 0 : i32
    %c0_i32_0 = arith.constant 0 : i32
    %c0_i32_1 = arith.constant 0 : i32
    return %c0_i32, %c0_i32_0 : i32, i32
  }
  func.func @transform_9(%arg0: i32) -> (i32, i32) {
    %c0_i32 = arith.constant 0 : i32
    %c0_i32_0 = arith.constant 0 : i32
    %c0_i32_1 = arith.constant 0 : i32
    return %c0_i32, %c0_i32_0 : i32, i32
  }
  func.func @transform_10(%arg0: i32) -> (i32, i32) {
    %c0_i32 = arith.constant 0 : i32
    %c0_i32_0 = arith.constant 0 : i32
    %c0_i32_1 = arith.constant 0 : i32
    return %c0_i32, %c0_i32_0 : i32, i32
  }
  func.func @transform_11(%arg0: i32) -> (i32, i32) {
    %c0_i32 = arith.constant 0 : i32
    %c0_i32_0 = arith.constant 0 : i32
    %c0_i32_1 = arith.constant 0 : i32
    return %c0_i32, %c0_i32_0 : i32, i32
  }
  func.func @transform_12(%arg0: i32) -> (i32, i32) {
    %c0_i32 = arith.constant 0 : i32
    %c0_i32_0 = arith.constant 0 : i32
    return %arg0, %c0_i32 : i32, i32
  }
}

</mosaic_0001>

<llo_original>
// kernel: encode_forward.1
$region0: #{encode_forward.1}
  #allocation0 [shape = 'u32[]', space=smem, size = 0x4, offset = 0x4, fixed_abs, tag = 'smem constant byte address 0x4 - core index']
  #allocation1 [shape = 'u32[72,128]{1,0:T(1,128)}', space=vmem, size = 0x9000, scoped, tag = 'internal scratch']
  %s0 = inlined_call_operand.vmem [shape: f32[32,32], index: 0, kind: input, shape index: {}]
  %s1 = inlined_call_operand.vmem [shape: f32[16,16], index: 1, kind: input, shape index: {}]
  %s2 = inlined_call_operand.vmem [shape: f32[32,32], index: 2, kind: input, shape index: {}]
  %s3 = inlined_call_operand.vmem [shape: f32[1,32], index: 3, kind: input, shape index: {}]
  %s4 = inlined_call_operand.vmem [shape: f32[32,128], index: 4, kind: input, shape index: {}]
  %s5 = inlined_call_operand.vmem [shape: f32[32,128], index: 5, kind: input, shape index: {}]
  %s6 = inlined_call_operand.vmem [shape: f32[1,128], index: 6, kind: input, shape index: {}]
  %s7 = inlined_call_operand.vmem [shape: f32[128,128], index: 7, kind: input, shape index: {}]
  %s8 = inlined_call_operand.vmem [shape: f32[16,128], index: 8, kind: input, shape index: {}]
  %s9 = inlined_call_operand.vmem [shape: f32[1,128], index: 9, kind: input, shape index: {}]
  %s10 = inlined_call_operand.vmem [shape: f32[128,128], index: 10, kind: input, shape index: {}]
  %s11 = inlined_call_operand.vmem [shape: f32[1,128], index: 11, kind: input, shape index: {}]
  %s12 = inlined_call_operand.vmem [shape: f32[16,128], index: 12, kind: output, shape index: {}]
  %s13 = sld [smem:[#allocation0]]
  $region81: #{encode_forward.1} parent=0
    _
  %s15 = ssub.s32 1, %s13
  %s16 = scalar_select 0, %s15, %s13
  loop: start=0, step=1, limit=4
  $region2: #{encode_forward.1} parent=0 // loop_pre_header
    _
  $region3: #{encode_forward.1} parent=0 // loop_header
    %s18 = sphi 0, %s22
    %p19 = scmp.ge.s32.totalorder %s18, 4
    %s28 = sphi 0, %s30
    %s31 = sphi 0, %s28
    %s32 = sphi 0, %s31
    %s48 = sphi 0, %s32
    %s54 = sphi 0, %s56
    %s57 = sphi 0, %s54
    %s58 = sphi 0, %s57
    %s74 = sphi 0, %s58
    %s78 = sphi 0, %s78
    %s80 = sphi 0, %s78
    %s81 = sphi 0, %s80
    %s95 = sphi 0, %s81
    %s99 = sphi 0, %s99
    %s101 = sphi 0, %s99
    %s102 = sphi 0, %s101
    %s116 = sphi 0, %s102
    %s120 = sphi 0, %s120
    %s122 = sphi 0, %s120
    %s123 = sphi 0, %s122
    %s137 = sphi 0, %s123
    %s141 = sphi 0, %s141
    %s143 = sphi 0, %s141
    %s144 = sphi 0, %s143
    %s158 = sphi 0, %s144
    %s162 = sphi 0, %s162
    %s164 = sphi 0, %s162
    %s165 = sphi 0, %s164
    %s179 = sphi 0, %s165
    %s183 = sphi 0, %s183
    %s185 = sphi 0, %s183
    %s186 = sphi 0, %s185
    %s200 = sphi 0, %s186
    %s204 = sphi 0, %s204
    %s206 = sphi 0, %s204
    %s207 = sphi 0, %s206
    %s221 = sphi 0, %s207
    %s225 = sphi 0, %s225
    %s227 = sphi 0, %s225
    %s228 = sphi 0, %s227
    %s242 = sphi 0, %s228
    %s246 = sphi 0, %s246
    %s248 = sphi 0, %s246
    %s249 = sphi 0, %s248
    %s263 = sphi 0, %s249
    %s267 = sphi 0, %s267
    %s269 = sphi 0, %s267
    %s270 = sphi 0, %s269
    %s284 = sphi 0, %s270
    %s290 = sphi 0, %s292
    %s293 = sphi 0, %s290
    %s294 = sphi 0, %s293
    %s310 = sphi 0, %s294
  $region4: #{encode_forward.1} parent=0 // loop_header_branch
    %21 = sbr.rel (%p19) target = $region8
  $region5: #{encode_forward.1} parent=0 // loop_body
    %s23 = ssub.s32 %s18, 1
    %s24 = ssub.s32 %s18, 2
    %s25 = sadd.s32 %s18, 1
    %s26 = ssub.s32 %s18, %s25
    %p27 = scmp.eq.s32.totalorder %s26, 0
    %s29 = sadd.s32 %s28, 1
    %s30 = scalar_select %p27, %s28, %s29
    %p33 = pneg %p27
    %p34 = scmp.eq.s32.totalorder %s18, 1
    %p35 = por %p33, %p34
    %p36 = scmp.ne.s32.totalorder %s28, %s31
    %p37 = scmp.eq.s32.totalorder %s18, 0
    %p38 = por %p36, %p37
    %p39 = scmp.ne.s32.totalorder %s28, %s31
    %p40 = scmp.eq.s32.totalorder %s23, 1
    %p41 = por %p39, %p40
    %p42 = scmp.ne.s32.totalorder %s31, %s32
    %p43 = scmp.eq.s32.totalorder %s23, 0
    %p44 = por %p42, %p43
    %p45 = scmp.ne.s32.totalorder %s31, %s32
    %p46 = scmp.eq.s32.totalorder %s24, 1
    %p47 = por %p45, %p46
    %p49 = scmp.ne.s32.totalorder %s32, %s48
    %p50 = scmp.eq.s32.totalorder %s24, 0
    %p51 = por %p49, %p50
    %s52 = ssub.s32 %s18, %s25
    %p53 = scmp.eq.s32.totalorder %s52, 0
    %s55 = sadd.s32 %s54, 1
    %s56 = scalar_select %p53, %s54, %s55
    %p59 = pneg %p53
    %p60 = scmp.eq.s32.totalorder %s18, 1
    %p61 = por %p59, %p60
    %p62 = scmp.ne.s32.totalorder %s54, %s57
    %p63 = scmp.eq.s32.totalorder %s18, 0
    %p64 = por %p62, %p63
    %p65 = scmp.ne.s32.totalorder %s54, %s57
    %p66 = scmp.eq.s32.totalorder %s23, 1
    %p67 = por %p65, %p66
    %p68 = scmp.ne.s32.totalorder %s57, %s58
    %p69 = scmp.eq.s32.totalorder %s23, 0
    %p70 = por %p68, %p69
    %p71 = scmp.ne.s32.totalorder %s57, %s58
    %p72 = scmp.eq.s32.totalorder %s24, 1
    %p73 = por %p71, %p72
    %p75 = scmp.ne.s32.totalorder %s58, %s74
    %p76 = scmp.eq.s32.totalorder %s24, 0
    %p77 = por %p75, %p76
    %s79 = sadd.s32 %s78, 1
    %p82 = scmp.eq.s32.totalorder %s18, 1
    %p83 = scmp.ne.s32.totalorder %s78, %s80
    %p84 = scmp.eq.s32.totalorder %s18, 0
    %p85 = por %p83, %p84
    %p86 = scmp.ne.s32.totalorder %s78, %s80
    %p87 = scmp.eq.s32.totalorder %s23, 1
    %p88 = por %p86, %p87
    %p89 = scmp.ne.s32.totalorder %s80, %s81
    %p90 = scmp.eq.s32.totalorder %s23, 0
    %p91 = por %p89, %p90
    %p92 = scmp.ne.s32.totalorder %s80, %s81
    %p93 = scmp.eq.s32.totalorder %s24, 1
    %p94 = por %p92, %p93
    %p96 = scmp.ne.s32.totalorder %s81, %s95
    %p97 = scmp.eq.s32.totalorder %s24, 0
    %p98 = por %p96, %p97
    %s100 = sadd.s32 %s99, 1
    %p103 = scmp.eq.s32.totalorder %s18, 1
    %p104 = scmp.ne.s32.totalorder %s99, %s101
    %p105 = scmp.eq.s32.totalorder %s18, 0
    %p106 = por %p104, %p105
    %p107 = scmp.ne.s32.totalorder %s99, %s101
    %p108 = scmp.eq.s32.totalorder %s23, 1
    %p109 = por %p107, %p108
    %p110 = scmp.ne.s32.totalorder %s101, %s102
    %p111 = scmp.eq.s32.totalorder %s23, 0
    %p112 = por %p110, %p111
    %p113 = scmp.ne.s32.totalorder %s101, %s102
    %p114 = scmp.eq.s32.totalorder %s24, 1
    %p115 = por %p113, %p114
    %p117 = scmp.ne.s32.totalorder %s102, %s116
    %p118 = scmp.eq.s32.totalorder %s24, 0
    %p119 = por %p117, %p118
    %s121 = sadd.s32 %s120, 1
    %p124 = scmp.eq.s32.totalorder %s18, 1
    %p125 = scmp.ne.s32.totalorder %s120, %s122
    %p126 = scmp.eq.s32.totalorder %s18, 0
    %p127 = por %p125, %p126
    %p128 = scmp.ne.s32.totalorder %s120, %s122
    %p129 = scmp.eq.s32.totalorder %s23, 1
    %p130 = por %p128, %p129
    %p131 = scmp.ne.s32.totalorder %s122, %s123
    %p132 = scmp.eq.s32.totalorder %s23, 0
    %p133 = por %p131, %p132
    %p134 = scmp.ne.s32.totalorder %s122, %s123
    %p135 = scmp.eq.s32.totalorder %s24, 1
    %p136 = por %p134, %p135
    %p138 = scmp.ne.s32.totalorder %s123, %s137
    %p139 = scmp.eq.s32.totalorder %s24, 0
    %p140 = por %p138, %p139
    %s142 = sadd.s32 %s141, 1
    %p145 = scmp.eq.s32.totalorder %s18, 1
    %p146 = scmp.ne.s32.totalorder %s141, %s143
    %p147 = scmp.eq.s32.totalorder %s18, 0
    %p148 = por %p146, %p147
    %p149 = scmp.ne.s32.totalorder %s141, %s143
    %p150 = scmp.eq.s32.totalorder %s23, 1
    %p151 = por %p149, %p150
    %p152 = scmp.ne.s32.totalorder %s143, %s144
    %p153 = scmp.eq.s32.totalorder %s23, 0
    %p154 = por %p152, %p153
    %p155 = scmp.ne.s32.totalorder %s143, %s144
    %p156 = scmp.eq.s32.totalorder %s24, 1
    %p157 = por %p155, %p156
    %p159 = scmp.ne.s32.totalorder %s144, %s158
    %p160 = scmp.eq.s32.totalorder %s24, 0
    %p161 = por %p159, %p160
    %s163 = sadd.s32 %s162, 1
    %p166 = scmp.eq.s32.totalorder %s18, 1
    %p167 = scmp.ne.s32.totalorder %s162, %s164
    %p168 = scmp.eq.s32.totalorder %s18, 0
    %p169 = por %p167, %p168
    %p170 = scmp.ne.s32.totalorder %s162, %s164
    %p171 = scmp.eq.s32.totalorder %s23, 1
    %p172 = por %p170, %p171
    %p173 = scmp.ne.s32.totalorder %s164, %s165
    %p174 = scmp.eq.s32.totalorder %s23, 0
    %p175 = por %p173, %p174
    %p176 = scmp.ne.s32.totalorder %s164, %s165
    %p177 = scmp.eq.s32.totalorder %s24, 1
    %p178 = por %p176, %p177
    %p180 = scmp.ne.s32.totalorder %s165, %s179
    %p181 = scmp.eq.s32.totalorder %s24, 0
    %p182 = por %p180, %p181
    %s184 = sadd.s32 %s183, 1
    %p187 = scmp.eq.s32.totalorder %s18, 1
    %p188 = scmp.ne.s32.totalorder %s183, %s185
    %p189 = scmp.eq.s32.totalorder %s18, 0
    %p190 = por %p188, %p189
    %p191 = scmp.ne.s32.totalorder %s183, %s185
    %p192 = scmp.eq.s32.totalorder %s23, 1
    %p193 = por %p191, %p192
    %p194 = scmp.ne.s32.totalorder %s185, %s186
    %p195 = scmp.eq.s32.totalorder %s23, 0
    %p196 = por %p194, %p195
    %p197 = scmp.ne.s32.totalorder %s185, %s186
    %p198 = scmp.eq.s32.totalorder %s24, 1
    %p199 = por %p197, %p198
    %p201 = scmp.ne.s32.totalorder %s186, %s200
    %p202 = scmp.eq.s32.totalorder %s24, 0
    %p203 = por %p201, %p202
    %s205 = sadd.s32 %s204, 1
    %p208 = scmp.eq.s32.totalorder %s18, 1
    %p209 = scmp.ne.s32.totalorder %s204, %s206
    %p210 = scmp.eq.s32.totalorder %s18, 0
    %p211 = por %p209, %p210
    %p212 = scmp.ne.s32.totalorder %s204, %s206
    %p213 = scmp.eq.s32.totalorder %s23, 1
    %p214 = por %p212, %p213
    %p215 = scmp.ne.s32.totalorder %s206, %s207
    %p216 = scmp.eq.s32.totalorder %s23, 0
    %p217 = por %p215, %p216
    %p218 = scmp.ne.s32.totalorder %s206, %s207
    %p219 = scmp.eq.s32.totalorder %s24, 1
    %p220 = por %p218, %p219
    %p222 = scmp.ne.s32.totalorder %s207, %s221
    %p223 = scmp.eq.s32.totalorder %s24, 0
    %p224 = por %p222, %p223
    %s226 = sadd.s32 %s225, 1
    %p229 = scmp.eq.s32.totalorder %s18, 1
    %p230 = scmp.ne.s32.totalorder %s225, %s227
    %p231 = scmp.eq.s32.totalorder %s18, 0
    %p232 = por %p230, %p231
    %p233 = scmp.ne.s32.totalorder %s225, %s227
    %p234 = scmp.eq.s32.totalorder %s23, 1
    %p235 = por %p233, %p234
    %p236 = scmp.ne.s32.totalorder %s227, %s228
    %p237 = scmp.eq.s32.totalorder %s23, 0
    %p238 = por %p236, %p237
    %p239 = scmp.ne.s32.totalorder %s227, %s228
    %p240 = scmp.eq.s32.totalorder %s24, 1
    %p241 = por %p239, %p240
    %p243 = scmp.ne.s32.totalorder %s228, %s242
    %p244 = scmp.eq.s32.totalorder %s24, 0
    %p245 = por %p243, %p244
    %s247 = sadd.s32 %s246, 1
    %p250 = scmp.eq.s32.totalorder %s18, 1
    %p251 = scmp.ne.s32.totalorder %s246, %s248
    %p252 = scmp.eq.s32.totalorder %s18, 0
    %p253 = por %p251, %p252
    %p254 = scmp.ne.s32.totalorder %s246, %s248
    %p255 = scmp.eq.s32.totalorder %s23, 1
    %p256 = por %p254, %p255
    %p257 = scmp.ne.s32.totalorder %s248, %s249
    %p258 = scmp.eq.s32.totalorder %s23, 0
    %p259 = por %p257, %p258
    %p260 = scmp.ne.s32.totalorder %s248, %s249
    %p261 = scmp.eq.s32.totalorder %s24, 1
    %p262 = por %p260, %p261
    %p264 = scmp.ne.s32.totalorder %s249, %s263
    %p265 = scmp.eq.s32.totalorder %s24, 0
    %p266 = por %p264, %p265
    %s268 = sadd.s32 %s267, 1
    %p271 = scmp.eq.s32.totalorder %s18, 1
    %p272 = scmp.ne.s32.totalorder %s267, %s269
    %p273 = scmp.eq.s32.totalorder %s18, 0
    %p274 = por %p272, %p273
    %p275 = scmp.ne.s32.totalorder %s267, %s269
    %p276 = scmp.eq.s32.totalorder %s23, 1
    %p277 = por %p275, %p276
    %p278 = scmp.ne.s32.totalorder %s269, %s270
    %p279 = scmp.eq.s32.totalorder %s23, 0
    %p280 = por %p278, %p279
    %p281 = scmp.ne.s32.totalorder %s269, %s270
    %p282 = scmp.eq.s32.totalorder %s24, 1
    %p283 = por %p281, %p282
    %p285 = scmp.ne.s32.totalorder %s270, %s284
    %p286 = scmp.eq.s32.totalorder %s24, 0
    %p287 = por %p285, %p286
    %s288 = ssub.s32 %s18, %s25
    %p289 = scmp.eq.s32.totalorder %s288, 0
    %s291 = sadd.s32 %s290, 1
    %s292 = scalar_select %p289, %s290, %s291
    %p295 = pneg %p289
    %p296 = scmp.eq.s32.totalorder %s18, 1
    %p297 = por %p295, %p296
    %p298 = scmp.ne.s32.totalorder %s290, %s293
    %p299 = scmp.eq.s32.totalorder %s18, 0
    %p300 = por %p298, %p299
    %p301 = scmp.ne.s32.totalorder %s290, %s293
    %p302 = scmp.eq.s32.totalorder %s23, 1
    %p303 = por %p301, %p302
    %p304 = scmp.ne.s32.totalorder %s293, %s294
    %p305 = scmp.eq.s32.totalorder %s23, 0
    %p306 = por %p304, %p305
    %p307 = scmp.ne.s32.totalorder %s293, %s294
    %p308 = scmp.eq.s32.totalorder %s24, 1
    %p309 = por %p307, %p308
    %p311 = scmp.ne.s32.totalorder %s294, %s310
    %p312 = scmp.eq.s32.totalorder %s24, 0
    %p313 = por %p311, %p312
    %p314 = scmp.le.s32.totalorder 1, %s18
    %p315 = scmp.lt.s32.totalorder %s18, 3
    %p316 = pnand %p314, %p315
    %p317 = pneg %p316
    // Predicated region
    $region9: #{encode_forward.1} parent=5 // pred_check
      _
    $region10: #{encode_forward.1} parent=5 // pred_check_branch
      %319 = sbr.rel (%p316) target = $region12
    $region11: #{encode_forward.1} parent=5 // pred_region
      %s320 = ssub.s32 %s18, 1
      // Predicated region
      $region13: #{encode_forward.1} parent=11 // pred_check
        %p321 = pneg %p91
      $region14: #{encode_forward.1} parent=11 // pred_check_branch
        %323 = sbr.rel (%p321) target = $region16
      $region15: #{encode_forward.1} parent=11 // pred_region
        _
      $region16: #{encode_forward.1} parent=11 // pred_fallthru
        _
      // Predicated region
      $region17: #{encode_forward.1} parent=11 // pred_check
        %p324 = pneg %p112
      $region18: #{encode_forward.1} parent=11 // pred_check_branch
        %326 = sbr.rel (%p324) target = $region20
      $region19: #{encode_forward.1} parent=11 // pred_region
        _
      $region20: #{encode_forward.1} parent=11 // pred_fallthru
        _
      // Predicated region
      $region21: #{encode_forward.1} parent=11 // pred_check
        %p327 = pneg %p133
      $region22: #{encode_forward.1} parent=11 // pred_check_branch
        %329 = sbr.rel (%p327) target = $region24
      $region23: #{encode_forward.1} parent=11 // pred_region
        _
      $region24: #{encode_forward.1} parent=11 // pred_fallthru
        _
      // Predicated region
      $region25: #{encode_forward.1} parent=11 // pred_check
        %p330 = pneg %p154
      $region26: #{encode_forward.1} parent=11 // pred_check_branch
        %332 = sbr.rel (%p330) target = $region28
      $region27: #{encode_forward.1} parent=11 // pred_region
        _
      $region28: #{encode_forward.1} parent=11 // pred_fallthru
        _
      // Predicated region
      $region29: #{encode_forward.1} parent=11 // pred_check
        %p333 = pneg %p175
      $region30: #{encode_forward.1} parent=11 // pred_check_branch
        %335 = sbr.rel (%p333) target = $region32
      $region31: #{encode_forward.1} parent=11 // pred_region
        _
      $region32: #{encode_forward.1} parent=11 // pred_fallthru
        _
      // Predicated region
      $region33: #{encode_forward.1} parent=11 // pred_check
        %p336 = pneg %p196
      $region34: #{encode_forward.1} parent=11 // pred_check_branch
        %338 = sbr.rel (%p336) target = $region36
      $region35: #{encode_forward.1} parent=11 // pred_region
        _
      $region36: #{encode_forward.1} parent=11 // pred_fallthru
        _
      // Predicated region
      $region37: #{encode_forward.1} parent=11 // pred_check
        %p339 = pneg %p217
      $region38: #{encode_forward.1} parent=11 // pred_check_branch
        %341 = sbr.rel (%p339) target = $region40
      $region39: #{encode_forward.1} parent=11 // pred_region
        _
      $region40: #{encode_forward.1} parent=11 // pred_fallthru
        _
      // Predicated region
      $region41: #{encode_forward.1} parent=11 // pred_check
        %p342 = pneg %p238
      $region42: #{encode_forward.1} parent=11 // pred_check_branch
        %344 = sbr.rel (%p342) target = $region44
      $region43: #{encode_forward.1} parent=11 // pred_region
        _
      $region44: #{encode_forward.1} parent=11 // pred_fallthru
        _
      // Predicated region
      $region45: #{encode_forward.1} parent=11 // pred_check
        %p345 = pneg %p259
      $region46: #{encode_forward.1} parent=11 // pred_check_branch
        %347 = sbr.rel (%p345) target = $region48
      $region47: #{encode_forward.1} parent=11 // pred_region
        _
      $region48: #{encode_forward.1} parent=11 // pred_fallthru
        _
      // Predicated region
      $region49: #{encode_forward.1} parent=11 // pred_check
        %p348 = pneg %p280
      $region50: #{encode_forward.1} parent=11 // pred_check_branch
        %350 = sbr.rel (%p348) target = $region52
      $region51: #{encode_forward.1} parent=11 // pred_region
        _
      $region52: #{encode_forward.1} parent=11 // pred_fallthru
        _
    $region12: #{encode_forward.1} parent=5 // pred_fallthru
      _
    %p351 = scmp.lt.s32.totalorder %s18, 2
    // Predicated region
    $region53: #{encode_forward.1} parent=5 // pred_check
      %p352 = pneg %p351
    $region54: #{encode_forward.1} parent=5 // pred_check_branch
      %354 = sbr.rel (%p352) target = $region56
    $region55: #{encode_forward.1} parent=5 // pred_region
      // Predicated region
      $region57: #{encode_forward.1} parent=55 // pred_check
        %p355 = pneg %p38
      $region58: #{encode_forward.1} parent=55 // pred_check_branch
        %357 = sbr.rel (%p355) target = $region60
      $region59: #{encode_forward.1} parent=55 // pred_region
        %s358 = smul.u32 2, %s18
        %p359 = scmp.lt.s32.totalorder %s358, 3
        %s360 = scalar_select %p359, %s358, 3
        %s361 = smul.addr %s360, 8
        %s362 = scalar_lea.vmem %s0, %s361
        %s363 = smul.u32 2, %s18
      $region60: #{encode_forward.1} parent=55 // pred_fallthru
        _
      // Predicated region
      $region61: #{encode_forward.1} parent=55 // pred_check
        %p364 = pneg %p64
      $region62: #{encode_forward.1} parent=55 // pred_check_branch
        %366 = sbr.rel (%p364) target = $region64
      $region63: #{encode_forward.1} parent=55 // pred_region
        %p367 = scmp.lt.s32.totalorder %s18, 1
        %s368 = scalar_select %p367, %s18, 1
        %s369 = smul.addr %s368, 8
        %s370 = scalar_lea.vmem %s1, %s369
      $region64: #{encode_forward.1} parent=55 // pred_fallthru
        _
    $region56: #{encode_forward.1} parent=5 // pred_fallthru
      _
    %p371 = scmp.le.s32.totalorder 1, %s18
    %p372 = scmp.lt.s32.totalorder %s18, 3
    %p373 = pnand %p371, %p372
    %p374 = pneg %p373
    // Predicated region
    $region65: #{encode_forward.1} parent=5 // pred_check
      _
    $region66: #{encode_forward.1} parent=5 // pred_check_branch
      %376 = sbr.rel (%p373) target = $region68
    $region67: #{encode_forward.1} parent=5 // pred_region
      %s377 = ssub.s32 %s18, 1
      %s378 = smul.u32 2, %s23
      %p379 = scmp.lt.s32.totalorder %s378, 3
      %s380 = scalar_select %p379, %s378, 3
      %s381 = smul.addr %s380, 8
      %s382 = scalar_lea.vmem %s0, %s381
      %p383 = pneg %p44
      %p384 = pneg %p41
      %p385 = scmp.lt.s32.totalorder %s23, 1
      %s386 = scalar_select %p385, %s23, 1
      %s387 = smul.addr %s386, 8
      %s388 = scalar_lea.vmem %s1, %s387
      %p389 = pneg %p70
      %p390 = pneg %p67
      %p391 = pneg %p91
      %p392 = pneg %p88
      %p393 = pneg %p112
      %p394 = pneg %p109
      %p395 = pneg %p133
      %p396 = pneg %p130
      %p397 = pneg %p154
      %p398 = pneg %p151
      %p399 = pneg %p175
      %p400 = pneg %p172
      %p401 = pneg %p196
      %p402 = pneg %p193
      %p403 = pneg %p217
      %p404 = pneg %p214
      %p405 = pneg %p238
      %p406 = pneg %p235
      %p407 = pneg %p259
      %p408 = pneg %p256
      %p409 = pneg %p280
      %p410 = pneg %p277
      %p411 = pneg %p306
      %p412 = pneg %p303
      %p413 = scmp.lt.s32.totalorder %s23, 1
      %s414 = scalar_select %p413, %s23, 1
      %s415 = smul.addr %s414, 8
      %s416 = scalar_lea.vmem %s12, %s415
      %s417 = smul.u32 2, %s23
      %p418 = scmp.lt.s32.totalorder %s417, 3
      %s419 = scalar_select %p418, %s417, 3
      %s420 = smul.addr %s419, 8
      %s421 = scalar_lea.vmem %s0, %s420
      %s422 = smul.u32 2, %s23
      %p423 = scmp.lt.s32.totalorder %s23, 1
      %s424 = scalar_select %p423, %s23, 1
      %s425 = smul.addr %s424, 8
      %s426 = scalar_lea.vmem %s1, %s425
      %p427 = scmp.lt.s32.totalorder %s23, 1
      %s428 = scalar_select %p427, %s23, 1
      %s429 = smul.addr %s428, 8
      %s430 = scalar_lea.vmem %s12, %s429
      %v431 = vld [vmem:[%s421] sm:$0xff]
      %v432 = vld [vmem:[%s421 + $0x8] sm:$0xff]
      %v433 = vld [vmem:[%s2] sm:$0xff]
      %v434 = vld [vmem:[%s2 + $0x8] sm:$0xff]
      %v435 = vld [vmem:[%s2 + $0x10] sm:$0xff]
      %v436 = vld [vmem:[%s2 + $0x18] sm:$0xff]
      %v437 = vld [vmem:[%s3] sm:$0x1]
      %v439 = vperm.slane %v437, 0
      %vm441 = vcmask 261120
      %v443 = vsel %vm441, %v431, 0
      %v446 = vsel %vm441, %v432, 0
      %448 = vmatpush.msra.mxu0 0.0
      %449 = vmatpush.msra.mxu0 0.0
      %450 = vmatpush.msra.mxu0 0.0
      %451 = vmatpush.msra.mxu0 0.0
      %452 = vmatpush.msra.mxu0 0.0
      %453 = vmatpush.msra.mxu0 0.0
      %454 = vmatpush.msra.mxu0 0.0
      %455 = vmatpush.msra.mxu0 0.0
      %456 = vmatpush.msra.mxu0 0.0
      %457 = vmatpush.msra.mxu0 0.0
      %458 = vmatpush.msra.mxu0 0.0
      %459 = vmatpush.msra.mxu0 0.0
      %460 = vmatpush.msra.mxu0 %v436
      %461 = vmatpush.msra.mxu0 %v435
      %462 = vmatpush.msra.mxu0 %v434
      %463 = vmatpush.msra.mxu0 %v433
      %464 = vmatmul.f32.gmra.mxu0 %v443
      %v465 = vpop.f32.mrf.mxu0
      %v466 = vadd.f32 %v439, %v465
      %467 = vmatmul.f32.gmra.mxu0 %v446
      %v468 = vpop.f32.mrf.mxu0
      %v469 = vadd.f32 %v439, %v468
      %470 = vdwg.mxu0
      %vm471 = vcmp.ge.f32.partialorder %v466, 0.0
      %vm472 = vcmp.ge.f32.partialorder %v469, 0.0
      %v473 = vmul.f32 %v466, 0.01
      %v474 = vmul.f32 %v469, 0.01
      %v475 = vsel %vm471, %v466, %v473
      %v476 = vsel %vm472, %v469, %v474
      %v477 = vld [vmem:[%s4] sm:$0xff]
      %v478 = vld [vmem:[%s4 + $0x8] sm:$0xff]
      %v479 = vld [vmem:[%s4 + $0x10] sm:$0xff]
      %v480 = vld [vmem:[%s4 + $0x18] sm:$0xff]
      %v482 = vsel %vm441, %v475, 0
      %v485 = vsel %vm441, %v476, 0
      %487 = vmatpush.msra.mxu0 0.0
      %488 = vmatpush.msra.mxu0 0.0
      %489 = vmatpush.msra.mxu0 0.0
      %490 = vmatpush.msra.mxu0 0.0
      %491 = vmatpush.msra.mxu0 0.0
      %492 = vmatpush.msra.mxu0 0.0
      %493 = vmatpush.msra.mxu0 0.0
      %494 = vmatpush.msra.mxu0 0.0
      %495 = vmatpush.msra.mxu0 0.0
      %496 = vmatpush.msra.mxu0 0.0
      %497 = vmatpush.msra.mxu0 0.0
      %498 = vmatpush.msra.mxu0 0.0
      %499 = vmatpush.msra.mxu0 %v480
      %500 = vmatpush.msra.mxu0 %v479
      %501 = vmatpush.msra.mxu0 %v478
      %502 = vmatpush.msra.mxu0 %v477
      %503 = vmatmul.f32.gmra.mxu0 %v482
      %v504 = vpop.f32.mrf.mxu0
      %v505 = vadd.f32 0.0, %v504
      %506 = vmatmul.f32.gmra.mxu0 %v485
      %v507 = vpop.f32.mrf.mxu0
      %v508 = vadd.f32 0.0, %v507
      %509 = vdwg.mxu0
      %v510 = vld [vmem:[%s5] sm:$0xff]
      %v511 = vld [vmem:[%s5 + $0x8] sm:$0xff]
      %v512 = vld [vmem:[%s5 + $0x10] sm:$0xff]
      %v513 = vld [vmem:[%s5 + $0x18] sm:$0xff]
      %514 = vmatpush.msra.mxu0 0.0
      %515 = vmatpush.msra.mxu0 0.0
      %516 = vmatpush.msra.mxu0 0.0
      %517 = vmatpush.msra.mxu0 0.0
      %518 = vmatpush.msra.mxu0 0.0
      %519 = vmatpush.msra.mxu0 0.0
      %520 = vmatpush.msra.mxu0 0.0
      %521 = vmatpush.msra.mxu0 0.0
      %522 = vmatpush.msra.mxu0 0.0
      %523 = vmatpush.msra.mxu0 0.0
      %524 = vmatpush.msra.mxu0 0.0
      %525 = vmatpush.msra.mxu0 0.0
      %526 = vmatpush.msra.mxu0 %v513
      %527 = vmatpush.msra.mxu0 %v512
      %528 = vmatpush.msra.mxu0 %v511
      %529 = vmatpush.msra.mxu0 %v510
      %530 = vmatmul.f32.gmra.mxu0 %v482
      %v531 = vpop.f32.mrf.mxu0
      %v532 = vadd.f32 0.0, %v531
      %533 = vmatmul.f32.gmra.mxu0 %v485
      %v534 = vpop.f32.mrf.mxu0
      %v535 = vadd.f32 0.0, %v534
      %536 = vdwg.mxu0
      %v538 = vrot.slane %v532, 4
      %v540 = vadd.f32 %v505, %v538
      %v542 = vrot.slane %v535, 4
      %v544 = vadd.f32 %v508, %v542
      %v546 = vrot.slane %v544, 4
      %vm548 = vcmask 1043456
      %v549 = vsel %vm548, %v540, %v546
      %v550 = vld [vmem:[%s6] sm:$0x1]
      %v552 = vperm.slane %v550, 0
      %v554 = vadd.f32 %v549, %v552
      %vm555 = vcmp.ge.f32.partialorder %v554, 0.0
      %v556 = vmul.f32 %v554, 0.01
      %v557 = vsel %vm555, %v554, %v556
      %v558 = vld [vmem:[%s426] sm:$0xff]
      %v559 = vld [vmem:[%s7] sm:$0xff]
      %v560 = vld [vmem:[%s7 + $0x8] sm:$0xff]
      %v561 = vld [vmem:[%s7 + $0x10] sm:$0xff]
      %v562 = vld [vmem:[%s7 + $0x18] sm:$0xff]
      %v563 = vld [vmem:[%s7 + $0x20] sm:$0xff]
      %v564 = vld [vmem:[%s7 + $0x28] sm:$0xff]
      %v565 = vld [vmem:[%s7 + $0x30] sm:$0xff]
      %v566 = vld [vmem:[%s7 + $0x38] sm:$0xff]
      %v567 = vld [vmem:[%s7 + $0x40] sm:$0xff]
      %v568 = vld [vmem:[%s7 + $0x48] sm:$0xff]
      %v569 = vld [vmem:[%s7 + $0x50] sm:$0xff]
      %v570 = vld [vmem:[%s7 + $0x58] sm:$0xff]
      %v571 = vld [vmem:[%s7 + $0x60] sm:$0xff]
      %v572 = vld [vmem:[%s7 + $0x68] sm:$0xff]
      %v573 = vld [vmem:[%s7 + $0x70] sm:$0xff]
      %v574 = vld [vmem:[%s7 + $0x78] sm:$0xff]
      %v575 = vld [vmem:[%s8] sm:$0xff]
      %v576 = vld [vmem:[%s8 + $0x8] sm:$0xff]
      %vm577 = vcmask 130048
      %v579 = vsel %vm577, %v558, 0
      %581 = vmatpush.msra.mxu0 0.0
      %582 = vmatpush.msra.mxu0 0.0
      %583 = vmatpush.msra.mxu0 0.0
      %584 = vmatpush.msra.mxu0 0.0
      %585 = vmatpush.msra.mxu0 0.0
      %586 = vmatpush.msra.mxu0 0.0
      %587 = vmatpush.msra.mxu0 0.0
      %588 = vmatpush.msra.mxu0 0.0
      %589 = vmatpush.msra.mxu0 0.0
      %590 = vmatpush.msra.mxu0 0.0
      %591 = vmatpush.msra.mxu0 0.0
      %592 = vmatpush.msra.mxu0 0.0
      %593 = vmatpush.msra.mxu0 0.0
      %594 = vmatpush.msra.mxu0 0.0
      %595 = vmatpush.msra.mxu0 %v576
      %596 = vmatpush.msra.mxu0 %v575
      %597 = vmatmul.f32.gmra.mxu0 %v579
      %v598 = vpop.f32.mrf.mxu0
      %v599 = vadd.f32 0.0, %v598
      %600 = vdwg.mxu0
      %601 = vmatpush.msra.mxu0 %v574
      %602 = vmatpush.msra.mxu0 %v573
      %603 = vmatpush.msra.mxu0 %v572
      %604 = vmatpush.msra.mxu0 %v571
      %605 = vmatpush.msra.mxu0 %v570
      %606 = vmatpush.msra.mxu0 %v569
      %607 = vmatpush.msra.mxu0 %v568
      %608 = vmatpush.msra.mxu0 %v567
      %609 = vmatpush.msra.mxu0 %v566
      %610 = vmatpush.msra.mxu0 %v565
      %611 = vmatpush.msra.mxu0 %v564
      %612 = vmatpush.msra.mxu0 %v563
      %613 = vmatpush.msra.mxu0 %v562
      %614 = vmatpush.msra.mxu0 %v561
      %615 = vmatpush.msra.mxu0 %v560
      %616 = vmatpush.msra.mxu0 %v559
      %617 = vmatmul.f32.gmra.mxu0 %v557
      %v618 = vpop.f32.mrf.mxu0
      %v619 = vadd.f32 %v599, %v618
      %620 = vdwg.mxu0
      %v621 = vld [vmem:[%s9] sm:$0x1]
      %v623 = vperm.slane %v621, 0
      %v625 = vadd.f32 %v619, %v623
      %vm626 = vcmp.ge.f32.partialorder %v625, 0.0
      %v627 = vmul.f32 %v625, 0.01
      %v628 = vsel %vm626, %v625, %v627
      %v629 = vld [vmem:[%s10] sm:$0xff]
      %v630 = vld [vmem:[%s10 + $0x8] sm:$0xff]
      %v631 = vld [vmem:[%s10 + $0x10] sm:$0xff]
      %v632 = vld [vmem:[%s10 + $0x18] sm:$0xff]
      %v633 = vld [vmem:[%s10 + $0x20] sm:$0xff]
      %v634 = vld [vmem:[%s10 + $0x28] sm:$0xff]
      %v635 = vld [vmem:[%s10 + $0x30] sm:$0xff]
      %v636 = vld [vmem:[%s10 + $0x38] sm:$0xff]
      %v637 = vld [vmem:[%s10 + $0x40] sm:$0xff]
      %v638 = vld [vmem:[%s10 + $0x48] sm:$0xff]
      %v639 = vld [vmem:[%s10 + $0x50] sm:$0xff]
      %v640 = vld [vmem:[%s10 + $0x58] sm:$0xff]
      %v641 = vld [vmem:[%s10 + $0x60] sm:$0xff]
      %v642 = vld [vmem:[%s10 + $0x68] sm:$0xff]
      %v643 = vld [vmem:[%s10 + $0x70] sm:$0xff]
      %v644 = vld [vmem:[%s10 + $0x78] sm:$0xff]
      %v645 = vld [vmem:[%s11] sm:$0x1]
      %v647 = vperm.slane %v645, 0
      %649 = vmatpush.msra.mxu0 %v644
      %650 = vmatpush.msra.mxu0 %v643
      %651 = vmatpush.msra.mxu0 %v642
      %652 = vmatpush.msra.mxu0 %v641
      %653 = vmatpush.msra.mxu0 %v640
      %654 = vmatpush.msra.mxu0 %v639
      %655 = vmatpush.msra.mxu0 %v638
      %656 = vmatpush.msra.mxu0 %v637
      %657 = vmatpush.msra.mxu0 %v636
      %658 = vmatpush.msra.mxu0 %v635
      %659 = vmatpush.msra.mxu0 %v634
      %660 = vmatpush.msra.mxu0 %v633
      %661 = vmatpush.msra.mxu0 %v632
      %662 = vmatpush.msra.mxu0 %v631
      %663 = vmatpush.msra.mxu0 %v630
      %664 = vmatpush.msra.mxu0 %v629
      %665 = vmatmul.f32.gmra.mxu0 %v628
      %v666 = vpop.f32.mrf.mxu0
      %v667 = vadd.f32 %v647, %v666
      %668 = vdwg.mxu0
      %vm669 = vcmp.ge.f32.partialorder %v667, 0.0
      %v670 = vmul.f32 %v667, 0.01
      %v671 = vsel %vm669, %v667, %v670
      %672 = vst [vmem:[%s430] sm:$0xff] %v671
      %p673 = scmp.lt.s32.totalorder %s23, 1
      %s674 = scalar_select %p673, %s23, 1
      %s675 = smul.addr %s674, 8
      %s676 = scalar_lea.vmem %s12, %s675
      // Predicated region
      $region69: #{encode_forward.1} parent=67 // pred_check
        %p677 = pneg %p303
      $region70: #{encode_forward.1} parent=67 // pred_check_branch
        %679 = sbr.rel (%p677) target = $region72
      $region71: #{encode_forward.1} parent=67 // pred_region
        _
      $region72: #{encode_forward.1} parent=67 // pred_fallthru
        _
    $region68: #{encode_forward.1} parent=5 // pred_fallthru
      _
    %p680 = scmp.le.s32.totalorder 2, %s18
    // Predicated region
    $region73: #{encode_forward.1} parent=5 // pred_check
      %p681 = pneg %p680
    $region74: #{encode_forward.1} parent=5 // pred_check_branch
      %683 = sbr.rel (%p681) target = $region76
    $region75: #{encode_forward.1} parent=5 // pred_region
      %s684 = ssub.s32 %s18, 2
      // Predicated region
      $region77: #{encode_forward.1} parent=75 // pred_check
        %p685 = pneg %p309
      $region78: #{encode_forward.1} parent=75 // pred_check_branch
        %687 = sbr.rel (%p685) target = $region80
      $region79: #{encode_forward.1} parent=75 // pred_region
        %p688 = scmp.lt.s32.totalorder %s24, 1
        %s689 = scalar_select %p688, %s24, 1
        %s690 = smul.addr %s689, 8
        %s691 = scalar_lea.vmem %s12, %s690
      $region80: #{encode_forward.1} parent=75 // pred_fallthru
        _
    $region76: #{encode_forward.1} parent=5 // pred_fallthru
      _
  $region6: #{encode_forward.1} parent=0 // loop_footer
    %s22 = sadd.s32 1, %s18
  $region7: #{encode_forward.1} parent=0 // loop_footer_branch
    %17 = sbr.rel target = $region3
  $region8: #{encode_forward.1} parent=0 // loop_exit
    _

</llo_original>
